<compile_context>
chip_gen: v7x
topology: tpu7x:2x2x1
jax: 0.10.0
libtpu: 0.0.40
codegen_flags: <defaults>
</compile_context>

<pallas_src>
import jax
import jax.numpy as jnp
from jax.experimental import pallas as pl
from jax.experimental.pallas import tpu as pltpu


def _vmem_capacity_bytes():
    try:
        info = pltpu.get_tpu_info()
        cap = getattr(info, "vmem_capacity_bytes", None)
        if cap:
            return int(cap)
    except Exception:
        pass
    return 64 * 1024 * 1024  # conservative default (v7x physical VMEM)


# --------------------------------------------------------------------------- #
# Kernels
# --------------------------------------------------------------------------- #
def _proj_y_kernel(tok_ref, wy_ref, by_ref, y_ref):
    # tok: (1, TS, tk)   per-b tokens slab, (t,s) rows, (h_,w_,c) lanes
    # wy : (TS, TS)      proj_Y weight (PyTorch [out, in] layout), resident
    # by : (TS, 1)       proj_Y bias, f32, resident
    # y  : (1, TS, tk)   per-b Y slab (f32)
    acc = jnp.dot(wy_ref[...], tok_ref[0], preferred_element_type=jnp.float32)
    y_ref[0] = (acc + by_ref[...]).astype(y_ref.dtype)


def _fuse_kernel(x_ref, wt_ref, bx_ref, y_ref, o_ref):
    # x : (Gb, C, HW)    orig features, native channels-first layout
    # wt: (C, K)         proj_X weight, transposed + feature-permuted to (S,H_,W_)
    # bx: (1, K)         proj_X bias (f32), same permutation
    # y : (Gb, K, C)     Y slabs (f32), K ordered (s, h_, w_)
    # o : (Gb, HW, C)    fused output, channels-last
    gb = x_ref.shape[0]
    wt = wt_ref[...]
    bx = bx_ref[...]
    mm_dt = x_ref.dtype
    for g in range(gb):                      # static unroll, gb <= 8
        xg = x_ref[g]                        # (C, HW)
        # z[p, k] = sum_c xg[c, p] * wt[c, k]  -- trans_a matmul on the MXU; the
        # channels-first -> channels-last flip never touches HBM.
        z = jax.lax.dot_general(xg, wt, (((0,), (0,)), ((), ())),
                                preferred_element_type=jnp.float32)
        # sigmoid(z) = 0.5 * (1 + tanh(z/2)) -- stable, tanh runs on the EUP slot
        bw = 0.5 * (jnp.tanh(0.5 * (z + bx)) + 1.0)
        yg = y_ref[g]                        # (K, C), f32
        og = jnp.dot(bw.astype(mm_dt), yg.astype(mm_dt),
                     preferred_element_type=jnp.float32)
        o_ref[g] = og.astype(o_ref.dtype)


# --------------------------------------------------------------------------- #
# Wrapper (only free reshapes + one tokens-sized transpose outside the kernels)
# --------------------------------------------------------------------------- #
def token_fuser_forward(orig_tensor, tokens, params, *, S, reduction="stack",
                        compute_dtype=jnp.float32,
                        y_lane_tile=None, g_block=None):
    """Forward pass of TokenFuser.  Returns (B, T, H, W, C) in float32."""
    Wy, by, Wx, bx = params["Wy"], params["by"], params["Wx"], params["bx"]
    B, T, C, H, W = orig_tensor.shape

    if reduction == "stack":
        Bt, Tt, SC, Hh, Ww = tokens.shape
        tok6 = tokens.reshape(Bt, Tt, S, SC // S, Hh, Ww)       # B T S C' H_ W_
    elif reduction == "concat":
        Bt, TSd, Ct_, Hh, Ww = tokens.shape
        tok6 = tokens.reshape(Bt, TSd // S, S, Ct_, Hh, Ww)     # B T S C' H_ W_
    else:
        raise ValueError(reduction)
    Bt, Tt, Ss, Ct, Hh, Ww = tok6.shape
    assert Bt == B and Tt == T, "token batch/frames must match orig_tensor"
    assert Ct == C, "token channel after split must equal orig channel"

    TS = Tt * Ss                 # proj_Y in/out feature dim
    K3 = Hh * Ww * C             # proj_Y lane extent, (h_, w_, c) order
    K = Ss * Hh * Ww             # HWS, fuse contraction dim, (s, h_, w_) order
    G, HW = B * T, H * W
    assert Wy.shape == (TS, TS)
    assert Wx.shape == (K, C)

    cd = jnp.dtype(compute_dtype)
    isz = cd.itemsize
    vmem_cap = _vmem_capacity_bytes()
    vmem_limit = int(min(vmem_cap * 3 // 4, vmem_cap - (4 << 20)))

    # ---------------- proj_Y: y3[b, (t,s), (h_,w_,c)] ------------------------
    # The only XLA relayout in the whole op (tokens-sized, smallest tensor).
    tok3 = tok6.transpose(0, 1, 2, 4, 5, 3).reshape(B, TS, K3).astype(cd)

    per_lane = TS * (2 * isz + 2 * 4)            # dbuf tok + dbuf f32 output
    budget_y = max(4 << 20, int(0.3 * vmem_cap))
    tk_cap = max(128, (budget_y // per_lane) // 128 * 128)
    tk_target = max(128, ((4 << 20) // (TS * isz)) // 128 * 128)  # ~4 MiB block
    if K3 % 128 == 0:
        tk = min(K3, tk_target, tk_cap)
        if y_lane_tile is not None:
            tk = min(tk, max(128, (int(y_lane_tile) // 128) * 128))
        # keep >= 4 grid steps so 'parallel' balances the two v7x TensorCores
        while B * pl.cdiv(K3, tk) < 4 and tk > 128:
            tk = max(128, (tk // 2) // 128 * 128)
    else:
        tk = K3                   # last block dim must be 128-mult or the full dim
    nk = pl.cdiv(K3, tk)

    # TODO(synk): add pipeline_mode=pl.Buffered(3) on the tok spec if a
    # wall-vs-compute gap remains on this streaming stage.
    y3 = pl.pallas_call(
        _proj_y_kernel,
        out_shape=jax.ShapeDtypeStruct((B, TS, K3), jnp.float32),
        grid=(B, nk),
        in_specs=[
            pl.BlockSpec((1, TS, tk), lambda b, k: (b, 0, k)),
            pl.BlockSpec((TS, TS), lambda b, k: (0, 0)),      # resident weight
            pl.BlockSpec((TS, 1), lambda b, k: (0, 0)),       # resident bias
        ],
        out_specs=pl.BlockSpec((1, TS, tk), lambda b, k: (b, 0, k)),
        compiler_params=pltpu.CompilerParams(
            dimension_semantics=("parallel", "parallel"),
            vmem_limit_bytes=vmem_limit),
    )(tok3, Wy.astype(cd), by.reshape(TS, 1).astype(jnp.float32))

    # Free reshape: (B, T*S, H_*W_*C) -> (B*T, S*H_*W_, C).  No HBM round trip.
    yr = y3.reshape(G, K, C)

    # ---------------- fuse: sigmoid(proj_X(x)) @ Y ---------------------------
    # Permute proj_X features from (h_, w_, s) to (s, h_, w_) to match yr's rows.
    wt = Wx.reshape(Hh, Ww, Ss, C).transpose(3, 2, 0, 1).reshape(C, K).astype(cd)
    bxp = bx.reshape(Hh, Ww, Ss).transpose(2, 0, 1).reshape(1, K).astype(jnp.float32)

    # orig in its native layout: free reshape, no channels-last transpose in XLA.
    xr = orig_tensor.reshape(G, C, HW).astype(cd)

    # VMEM accounting: double-buffered blocks + resident weights + intermediates.
    per_g = (2 * C * HW * isz       # x blocks (double buffered)
             + 2 * K * C * 4        # y blocks (f32, double buffered)
             + 2 * HW * C * 4)      # out blocks (f32, double buffered)
    interm = HW * K * (8 + isz) + 2 * HW * C * 4 + C * HW * 4
    resident = 2 * C * K * isz + 2 * K * 4
    budget_f = max(8 << 20, int(0.35 * vmem_cap))
    Gb = int(max(1, min(8, G, (budget_f - resident - interm) // max(per_g, 1))))
    if g_block is not None:
        Gb = int(max(1, min(Gb, g_block)))
    if G >= 4:
        Gb = min(Gb, max(1, pl.cdiv(G, 4)))   # keep >= ~4 steps for TC balance
    for d in range(Gb, 0, -1):                # prefer a tail-free block count
        if G % d == 0:
            if 2 * d >= Gb:
                Gb = d
            break
    grid_g = pl.cdiv(G, Gb)

    out = pl.pallas_call(
        _fuse_kernel,
        out_shape=jax.ShapeDtypeStruct((G, HW, C), jnp.float32),
        grid=(grid_g,),
        in_specs=[
            pl.BlockSpec((Gb, C, HW), lambda i: (i, 0, 0)),
            pl.BlockSpec((C, K), lambda i: (0, 0)),           # resident weight
            pl.BlockSpec((1, K), lambda i: (0, 0)),           # resident bias
            pl.BlockSpec((Gb, K, C), lambda i: (i, 0, 0)),
        ],
        out_specs=pl.BlockSpec((Gb, HW, C), lambda i: (i, 0, 0)),
        compiler_params=pltpu.CompilerParams(
            dimension_semantics=("parallel",),
            vmem_limit_bytes=vmem_limit),
    )(xr, wt, bxp, yr)

    # TODO(synk): optionally zero-pad K = H_*W_*S (rows of yr / columns of wt) to a
    # 128 multiple for lane-dense z/bw tiles at ragged HWS; skipped here to avoid
    # reintroducing a Y-sized HBM copy.
    return out.reshape(B, T, H, W, C)


# --------------------------------------------------------------------------- #
# Pure-JAX reference (mirrors the PyTorch forward exactly)
# --------------------------------------------------------------------------- #
def token_fuser_ref(orig_tensor, tokens, params, *, S, reduction="stack"):
    Wy, by, Wx, bx = params["Wy"], params["by"], params["Wx"], params["bx"]
    B, T, C, H, W = orig_tensor.shape
    if reduction == "stack":
        Bt, Tt, SC, Hh, Ww = tokens.shape
        tok = tokens.reshape(Bt, Tt, S, SC // S, Hh, Ww)
    else:
        Bt, TSdim, Ct, Hh, Ww = tokens.shape
        tok = tokens.reshape(Bt, TSdim // S, S, Ct, Hh, Ww)
    tok = tok.transpose(0, 3, 4, 5, 1, 2)                       # B C' H_ W_ T S
    Bt, Ctok, Hh, Ww, Ttok, Ss = tok.shape
    tok_r = tok.reshape(Bt, Ctok, Hh, Ww, Ttok * Ss)

    Y = tok_r @ Wy.T + by
    Yr = Y.reshape(Bt, Ctok, Hh, Ww, Ttok, Ss)
    Yr = Yr.transpose(0, 4, 2, 3, 5, 1).reshape(Bt * Ttok, Hh * Ww * Ss, Ctok)

    Bw = orig_tensor.transpose(0, 1, 3, 4, 2)
    Bw = jax.nn.sigmoid(Bw @ Wx.T + bx)
    Bw = Bw.reshape(B * T, H * W, Hh * Ww * Ss)

    BwY = jnp.einsum("gmk,gkn->gmn", Bw, Yr)
    return BwY.reshape(B, T, H, W, C)


# --------------------------------------------------------------------------- #
if __name__ == "__main__":
    def make_case(key, B, T, C, S, Hh, Ww, H, W):
        C_tok = S * C                      # 'stack' token channel
        TS = T * S
        HWS = Hh * Ww * S
        ks = jax.random.split(key, 6)
        params = {
            "Wy": jax.random.normal(ks[0], (TS, TS), jnp.float32) * 0.1,
            "by": jax.random.normal(ks[1], (TS,), jnp.float32) * 0.1,
            "Wx": jax.random.normal(ks[2], (HWS, C), jnp.float32) * 0.1,
            "bx": jax.random.normal(ks[3], (HWS,), jnp.float32) * 0.1,
        }
        orig = jax.random.normal(ks[4], (B, T, C, H, W), jnp.float32)
        tokens = jax.random.normal(ks[5], (B, T, C_tok, Hh, Ww), jnp.float32)
        return orig, tokens, params

    key = jax.random.PRNGKey(0)
    k1, k2 = jax.random.split(key)

    # --- case 1: module default-ish config C=4, S=2, H_=W_=4, 'stack' -----------
    orig1, tok1, p1 = make_case(k1, B=2, T=2, C=4, S=2, Hh=4, Ww=4, H=8, W=8)
    out1 = jax.block_until_ready(token_fuser_forward(orig1, tok1, p1, S=2))
    ref1 = token_fuser_ref(orig1, tok1, p1, S=2)
    assert out1.shape == (2, 2, 8, 8, 4)
    assert jnp.allclose(out1, ref1, atol=1e-4, rtol=1e-4)

    # --- case 2: multi-step grids on both kernels (nk=2, Gb=2, grid_g=3) --------
    orig2, tok2, p2 = make_case(k2, B=3, T=2, C=16, S=2, Hh=4, Ww=4, H=8, W=8)
    out2 = jax.block_until_ready(
        token_fuser_forward(orig2, tok2, p2, S=2, y_lane_tile=128, g_block=2))
    ref2 = token_fuser_ref(orig2, tok2, p2, S=2)
    assert jnp.allclose(out2, ref2, atol=1e-4, rtol=1e-4)

    # --- case 3: bf16 matmul operands / f32 accumulation (v6e / v7x fast path) --
    out3 = jax.block_until_ready(
        token_fuser_forward(orig2, tok2, p2, S=2, compute_dtype=jnp.bfloat16))
    assert jnp.allclose(out3, ref2, atol=1e-1, rtol=1e-1)

    print("KERNEL_OK")
</pallas_src>

<mosaic_0001>
module attributes {stable_mosaic.version = 11 : i64} {
  func.func @_proj_y_kernel(%arg0: i32, %arg1: i32, %arg2: memref<1x4x64xf32, #tpu.memory_space<vmem>>, %arg3: memref<4x4xf32, #tpu.memory_space<vmem>>, %arg4: memref<4x1xf32, #tpu.memory_space<vmem>>, %arg5: memref<1x4x64xf32, #tpu.memory_space<vmem>>) attributes {dimension_semantics = [#tpu.dimension_semantics<parallel>, #tpu.dimension_semantics<parallel>], iteration_bounds = array<i64: 2, 1>, scalar_prefetch = 0 : i64, scratch_operands = 0 : i64, tpu.core_type = #tpu.core_type<tc>, window_params = [{transform_indices = @transform_0, window_bounds = array<i64: 1, 4, 64>}, {pipeline_mode = #tpu.pipeline_mode<synchronous>, transform_indices = @transform_1, window_bounds = array<i64: 4, 4>}, {pipeline_mode = #tpu.pipeline_mode<synchronous>, transform_indices = @transform_2, window_bounds = array<i64: 4, 1>}, {transform_indices = @transform_3, window_bounds = array<i64: 1, 4, 64>}]} {
    %c0 = arith.constant 0 : index
    %c0_0 = arith.constant 0 : index
    %0 = vector.load %arg3[%c0, %c0_0] : memref<4x4xf32, #tpu.memory_space<vmem>>, vector<4x4xf32>
    %c0_1 = arith.constant 0 : index
    %c0_2 = arith.constant 0 : index
    %c0_3 = arith.constant 0 : index
    %1 = vector.load %arg2[%c0_1, %c0_2, %c0_3] : memref<1x4x64xf32, #tpu.memory_space<vmem>>, vector<1x4x64xf32>
    %2 = vector.shape_cast %1 : vector<1x4x64xf32> to vector<4x64xf32>
    %cst = arith.constant dense<0.000000e+00> : vector<4x64xf32>
    %3 = tpu.matmul %0, %2, %cst {dimension_numbers = #tpu.dot_dimension_numbers<[1], [0], [0], [1], [0, 0, 1, 1], [], []>} : vector<4x4xf32>, vector<4x64xf32>, vector<4x64xf32> -> vector<4x64xf32>
    %c0_4 = arith.constant 0 : index
    %c0_5 = arith.constant 0 : index
    %4 = vector.load %arg4[%c0_4, %c0_5] : memref<4x1xf32, #tpu.memory_space<vmem>>, vector<4x1xf32>
    %5 = vector.broadcast %4 : vector<4x1xf32> to vector<4x64xf32>
    %6 = arith.addf %3, %5 : vector<4x64xf32>
    %c0_6 = arith.constant 0 : index
    %c0_7 = arith.constant 0 : index
    %c0_8 = arith.constant 0 : index
    %7 = vector.load %arg5[%c0_6, %c0_7, %c0_8] : memref<1x4x64xf32, #tpu.memory_space<vmem>>, vector<1x4x64xf32>
    %8 = vector.shape_cast %7 : vector<1x4x64xf32> to vector<4x64xf32>
    %9 = vector.shape_cast %6 : vector<4x64xf32> to vector<1x4x64xf32>
    tpu.vector_store %arg5[%c0_6, %c0_7, %c0_8], %9 {strides = array<i32>} : memref<1x4x64xf32, #tpu.memory_space<vmem>>, vector<1x4x64xf32>,
    return
  }
  func.func @transform_0(%arg0: i32, %arg1: i32) -> (i32, i32, i32) {
    %c0_i32 = arith.constant 0 : i32
    %c0_i32_0 = arith.constant 0 : i32
    return %arg0, %c0_i32, %arg1 : i32, i32, i32
  }
  func.func @transform_1(%arg0: i32, %arg1: i32) -> (i32, i32) {
    %c0_i32 = arith.constant 0 : i32
    %c0_i32_0 = arith.constant 0 : i32
    %c0_i32_1 = arith.constant 0 : i32
    return %c0_i32, %c0_i32_0 : i32, i32
  }
  func.func @transform_2(%arg0: i32, %arg1: i32) -> (i32, i32) {
    %c0_i32 = arith.constant 0 : i32
    %c0_i32_0 = arith.constant 0 : i32
    %c0_i32_1 = arith.constant 0 : i32
    return %c0_i32, %c0_i32_0 : i32, i32
  }
  func.func @transform_3(%arg0: i32, %arg1: i32) -> (i32, i32, i32) {
    %c0_i32 = arith.constant 0 : i32
    %c0_i32_0 = arith.constant 0 : i32
    return %arg0, %c0_i32, %arg1 : i32, i32, i32
  }
}

</mosaic_0001>

<llo_original>
// kernel: tpu_custom_call.1
$region0: #{tpu_custom_call.1}
  #allocation0 [shape = 'u32[]', space=smem, size = 0x4, offset = 0x4, fixed_abs, tag = 'smem constant byte address 0x4 - core index']
  #allocation1 [shape = 'u32[144,128]{1,0:T(1,128)}', space=vmem, size = 0x12000, scoped, tag = 'internal scratch']
  %s0 = inlined_call_operand.hbm [shape: f32[2,4,64], index: 0, kind: input, shape index: {}]
  %s1 = inlined_call_operand.vmem [shape: f32[4,4], index: 1, kind: input, shape index: {}]
  %s2 = inlined_call_operand.vmem [shape: f32[4,1], index: 2, kind: input, shape index: {}]
  %s3 = inlined_call_operand.hbm [shape: f32[2,4,64], index: 3, kind: output, shape index: {}]
  %s4 = sld [smem:[#allocation0]]
  $region49: #{tpu_custom_call.1} parent=0
    _
  %s6 = ssub.s32 1, %s4
  %s7 = scalar_select 0, %s6, %s4
  $region1: #{tpu_custom_call.1} parent=0
    #allocation2 [shape = 'u8[4096]{0}', space=vmem, size = 0x1000, scoped, tag = 'input window, operand 0']
    #allocation3 [shape = 's32[2]{0}', space=sflag, size = 0x8, scoped, tag = 'scoped memory for tpu_custom_call.1']
    #allocation4 [shape = 's32[2]{0}', space=sflag, size = 0x8, scoped, tag = 'scoped memory for tpu_custom_call.1']
    #allocation5 [shape = 'u8[4096]{0}', space=vmem, size = 0x1000, scoped, tag = 'output window, operand 0']
    %8 = vsyncpa [#allocation3], 0
    %s9 = scalar_lea.sflag [#allocation3], 1
    %10 = vsyncpa %s9, 0
    %11 = vsyncpa [#allocation4], 0
    %s12 = scalar_lea.sflag [#allocation4], 1
    %13 = vsyncpa %s12, 0
    loop: start=0, step=1, limit=4
    $region2: #{tpu_custom_call.1} parent=1 // loop_pre_header
      _
    $region3: #{tpu_custom_call.1} parent=1 // loop_header
      %s15 = sphi 0, %s19
      %p16 = scmp.ge.s32.totalorder %s15, 4
      %s22 = sphi 0, %s34
      %s23 = sphi 0, %s30
      %s24 = sphi 0, %s22
      %s25 = sphi 0, %s23
      %s26 = sphi 0, %s24
      %s27 = sphi 0, %s25
      %s39 = sphi 0, %s41
      %s42 = sphi 0, %s39
      %s43 = sphi 0, %s42
      %s59 = sphi 0, %s43
      %s63 = sphi 0, %s63
      %s65 = sphi 0, %s63
      %s66 = sphi 0, %s65
      %s80 = sphi 0, %s66
      %s84 = sphi 0, %s84
      %s86 = sphi 0, %s84
      %s87 = sphi 0, %s86
      %s101 = sphi 0, %s87
      %s109 = sphi 0, %s111
      %s112 = sphi 0, %s109
      %s113 = sphi 0, %s112
      %s129 = sphi 0, %s113
    $region4: #{tpu_custom_call.1} parent=1 // loop_header_branch
      %18 = sbr.rel (%p16) target = $region8
    $region5: #{tpu_custom_call.1} parent=1 // loop_body
      %s20 = ssub.s32 %s15, 1
      %s21 = ssub.s32 %s15, 2
      %s28 = sadd.s32 1, %s23
      %p29 = scmp.ge.s32.totalorder %s28, 1
      %s30 = scalar_select %p29, 0, %s28
      %s31 = sadd.s32 1, %s22
      %s32 = scalar_select %p29, %s31, %s22
      %p33 = scmp.ge.s32.totalorder %s32, 2
      %s34 = scalar_select %p33, 0, %s32
      %s35 = ssub.s32 %s22, %s34
      %s36 = ssub.s32 %s23, %s30
      %s37 = sor.u32 %s35, %s36
      %p38 = scmp.eq.s32.totalorder %s37, 0
      %s40 = sadd.s32 %s39, 1
      %s41 = scalar_select %p38, %s39, %s40
      %p44 = pneg %p38
      %p45 = scmp.eq.s32.totalorder %s15, 1
      %p46 = por %p44, %p45
      %p47 = scmp.ne.s32.totalorder %s39, %s42
      %p48 = scmp.eq.s32.totalorder %s15, 0
      %p49 = por %p47, %p48
      %p50 = scmp.ne.s32.totalorder %s39, %s42
      %p51 = scmp.eq.s32.totalorder %s20, 1
      %p52 = por %p50, %p51
      %p53 = scmp.ne.s32.totalorder %s42, %s43
      %p54 = scmp.eq.s32.totalorder %s20, 0
      %p55 = por %p53, %p54
      %p56 = scmp.ne.s32.totalorder %s42, %s43
      %p57 = scmp.eq.s32.totalorder %s21, 1
      %p58 = por %p56, %p57
      %p60 = scmp.ne.s32.totalorder %s43, %s59
      %p61 = scmp.eq.s32.totalorder %s21, 0
      %p62 = por %p60, %p61
      %s64 = sadd.s32 %s63, 1
      %p67 = scmp.eq.s32.totalorder %s15, 1
      %p68 = scmp.ne.s32.totalorder %s63, %s65
      %p69 = scmp.eq.s32.totalorder %s15, 0
      %p70 = por %p68, %p69
      %p71 = scmp.ne.s32.totalorder %s63, %s65
      %p72 = scmp.eq.s32.totalorder %s20, 1
      %p73 = por %p71, %p72
      %p74 = scmp.ne.s32.totalorder %s65, %s66
      %p75 = scmp.eq.s32.totalorder %s20, 0
      %p76 = por %p74, %p75
      %p77 = scmp.ne.s32.totalorder %s65, %s66
      %p78 = scmp.eq.s32.totalorder %s21, 1
      %p79 = por %p77, %p78
      %p81 = scmp.ne.s32.totalorder %s66, %s80
      %p82 = scmp.eq.s32.totalorder %s21, 0
      %p83 = por %p81, %p82
      %s85 = sadd.s32 %s84, 1
      %p88 = scmp.eq.s32.totalorder %s15, 1
      %p89 = scmp.ne.s32.totalorder %s84, %s86
      %p90 = scmp.eq.s32.totalorder %s15, 0
      %p91 = por %p89, %p90
      %p92 = scmp.ne.s32.totalorder %s84, %s86
      %p93 = scmp.eq.s32.totalorder %s20, 1
      %p94 = por %p92, %p93
      %p95 = scmp.ne.s32.totalorder %s86, %s87
      %p96 = scmp.eq.s32.totalorder %s20, 0
      %p97 = por %p95, %p96
      %p98 = scmp.ne.s32.totalorder %s86, %s87
      %p99 = scmp.eq.s32.totalorder %s21, 1
      %p100 = por %p98, %p99
      %p102 = scmp.ne.s32.totalorder %s87, %s101
      %p103 = scmp.eq.s32.totalorder %s21, 0
      %p104 = por %p102, %p103
      %s105 = ssub.s32 %s22, %s34
      %s106 = ssub.s32 %s23, %s30
      %s107 = sor.u32 %s105, %s106
      %p108 = scmp.eq.s32.totalorder %s107, 0
      %s110 = sadd.s32 %s109, 1
      %s111 = scalar_select %p108, %s109, %s110
      %p114 = pneg %p108
      %p115 = scmp.eq.s32.totalorder %s15, 1
      %p116 = por %p114, %p115
      %p117 = scmp.ne.s32.totalorder %s109, %s112
      %p118 = scmp.eq.s32.totalorder %s15, 0
      %p119 = por %p117, %p118
      %p120 = scmp.ne.s32.totalorder %s109, %s112
      %p121 = scmp.eq.s32.totalorder %s20, 1
      %p122 = por %p120, %p121
      %p123 = scmp.ne.s32.totalorder %s112, %s113
      %p124 = scmp.eq.s32.totalorder %s20, 0
      %p125 = por %p123, %p124
      %p126 = scmp.ne.s32.totalorder %s112, %s113
      %p127 = scmp.eq.s32.totalorder %s21, 1
      %p128 = por %p126, %p127
      %p130 = scmp.ne.s32.totalorder %s113, %s129
      %p131 = scmp.eq.s32.totalorder %s21, 0
      %p132 = por %p130, %p131
      %p133 = scmp.le.s32.totalorder 1, %s15
      %p134 = scmp.lt.s32.totalorder %s15, 3
      %p135 = pnand %p133, %p134
      %p136 = pneg %p135
      // Predicated region
      $region9: #{tpu_custom_call.1} parent=5 // pred_check
        _
      $region10: #{tpu_custom_call.1} parent=5 // pred_check_branch
        %138 = sbr.rel (%p135) target = $region12
      $region11: #{tpu_custom_call.1} parent=5 // pred_region
        %s139 = ssub.s32 %s15, 1
        // Predicated region
        $region13: #{tpu_custom_call.1} parent=11 // pred_check
          %p140 = pneg %p76
        $region14: #{tpu_custom_call.1} parent=11 // pred_check_branch
          %142 = sbr.rel (%p140) target = $region16
        $region15: #{tpu_custom_call.1} parent=11 // pred_region
          _
        $region16: #{tpu_custom_call.1} parent=11 // pred_fallthru
          _
        // Predicated region
        $region17: #{tpu_custom_call.1} parent=11 // pred_check
          %p143 = pneg %p97
        $region18: #{tpu_custom_call.1} parent=11 // pred_check_branch
          %145 = sbr.rel (%p143) target = $region20
        $region19: #{tpu_custom_call.1} parent=11 // pred_region
          _
        $region20: #{tpu_custom_call.1} parent=11 // pred_fallthru
          _
      $region12: #{tpu_custom_call.1} parent=5 // pred_fallthru
        _
      %p146 = scmp.lt.s32.totalorder %s15, 2
      // Predicated region
      $region21: #{tpu_custom_call.1} parent=5 // pred_check
        %p147 = pneg %p146
      $region22: #{tpu_custom_call.1} parent=5 // pred_check_branch
        %149 = sbr.rel (%p147) target = $region24
      $region23: #{tpu_custom_call.1} parent=5 // pred_region
        // Predicated region
        $region25: #{tpu_custom_call.1} parent=23 // pred_check
          %p150 = pneg %p49
        $region26: #{tpu_custom_call.1} parent=23 // pred_check_branch
          %152 = sbr.rel (%p150) target = $region28
        $region27: #{tpu_custom_call.1} parent=23 // pred_region
          %s153 = sand.u32 %s39, 1
          %s154 = scalar_lea.sflag [#allocation3], %s153
          %s155 = sand.u32 %s39, 1
          %s156 = smul.addr %s155, 4
          %s157 = scalar_lea.vmem [#allocation2], %s156
          %s159 = ssub.s32 64, 64
          %160 = vsyncadd %s154, %s159
          %s161 = sadd.s32 %s23, %s22
          %s162 = smul.addr %s161, 64
          %s163 = scalar_lea.hbm %s0, %s162
          %s165 = sshll.u32 %s157, 4
          %s166 = int_to_ptr.vmem [resolvable:$true] %s165
          %168 = dma.hbm_to_vmem [thread:$0]  %s163, 64, %s166, %s154
        $region28: #{tpu_custom_call.1} parent=23 // pred_fallthru
          _
      $region24: #{tpu_custom_call.1} parent=5 // pred_fallthru
        _
      %p169 = scmp.le.s32.totalorder 1, %s15
      %p170 = scmp.lt.s32.totalorder %s15, 3
      %p171 = pnand %p169, %p170
      %p172 = pneg %p171
      // Predicated region
      $region29: #{tpu_custom_call.1} parent=5 // pred_check
        _
      $region30: #{tpu_custom_call.1} parent=5 // pred_check_branch
        %174 = sbr.rel (%p171) target = $region32
      $region31: #{tpu_custom_call.1} parent=5 // pred_region
        %s175 = ssub.s32 %s15, 1
        %s176 = sand.u32 %s42, 1
        %s177 = scalar_lea.sflag [#allocation3], %s176
        %s178 = sand.u32 %s42, 1
        %s179 = smul.addr %s178, 4
        %s180 = scalar_lea.vmem [#allocation2], %s179
        // Predicated region
        $region33: #{tpu_custom_call.1} parent=31 // pred_check
          %p181 = pneg %p55
        $region34: #{tpu_custom_call.1} parent=31 // pred_check_branch
          %183 = sbr.rel (%p181) target = $region36
        $region35: #{tpu_custom_call.1} parent=31 // pred_region
          %184 = dma.done %s177, 64
        $region36: #{tpu_custom_call.1} parent=31 // pred_fallthru
          _
        %s185 = sand.u32 %s42, 1
        %s186 = scalar_lea.sflag [#allocation3], %s185
        %s187 = sand.u32 %s42, 1
        %s188 = smul.addr %s187, 4
        %s189 = scalar_lea.vmem [#allocation2], %s188
        %p190 = pneg %p55
        %p191 = pneg %p52
        %p192 = pneg %p76
        %p193 = pneg %p73
        %p194 = pneg %p97
        %p195 = pneg %p94
        %p196 = pneg %p125
        %p197 = pneg %p122
        %s198 = sand.u32 %s112, 1
        %s199 = scalar_lea.sflag [#allocation4], %s198
        %s200 = sand.u32 %s112, 1
        %s201 = smul.addr %s200, 4
        %s202 = scalar_lea.vmem [#allocation5], %s201
        %v203 = vld [vmem:[%s1] sm:$0xf]
        %v204 = vld [vmem:[%s180] sm:$0xf]
        %v205 = vld [vmem:[%s2] sm:$0xf]
        %207 = vset.pattern.permute.xlu0 0
        %208 = vperm.xlu0 %207, %v205
        %v209 = vpop.permute.xlu0 %208
        %vm211 = vcmask 31744
        %v213 = vsel %vm211, %v203, 0
        %vm215 = vcmask 1043456
        %v217 = vsel %vm215, %v204, 0
        %219 = vmatprep.subr.mxu0 0.0
        %220 = vmatpush1.msra.mxu0 %v217
        %221 = vmatprep.subr.mxu0 0.0
        %222 = vmatpush1.msra.mxu0 0.0
        %223 = vmatprep.subr.mxu0 0.0
        %224 = vmatpush1.msra.mxu0 0.0
        %225 = vmatprep.subr.mxu0 0.0
        %226 = vmatpush1.msra.mxu0 0.0
        %227 = vmatprep.subr.mxu0 0.0
        %228 = vmatpush1.msra.mxu0 0.0
        %229 = vmatprep.subr.mxu0 0.0
        %230 = vmatpush1.msra.mxu0 0.0
        %231 = vmatprep.subr.mxu0 0.0
        %232 = vmatpush1.msra.mxu0 0.0
        %233 = vmatprep.subr.mxu0 0.0
        %234 = vmatpush1.msra.mxu0 0.0
        %235 = vmatprep.subr.mxu0 0.0
        %236 = vmatpush1.msra.mxu0 0.0
        %237 = vmatprep.subr.mxu0 0.0
        %238 = vmatpush1.msra.mxu0 0.0
        %239 = vmatprep.subr.mxu0 0.0
        %240 = vmatpush1.msra.mxu0 0.0
        %241 = vmatprep.subr.mxu0 0.0
        %242 = vmatpush1.msra.mxu0 0.0
        %243 = vmatprep.subr.mxu0 0.0
        %244 = vmatpush1.msra.mxu0 0.0
        %245 = vmatprep.subr.mxu0 0.0
        %246 = vmatpush1.msra.mxu0 0.0
        %247 = vmatprep.subr.mxu0 0.0
        %248 = vmatpush1.msra.mxu0 0.0
        %249 = vmatprep.subr.mxu0 0.0
        %250 = vmatpush1.msra.mxu0 0.0
        %251 = vmatprep.subr.mxu0 0.0
        %252 = vmatpush1.msra.mxu0 0.0
        %253 = vmatprep.subr.mxu0 0.0
        %254 = vmatpush1.msra.mxu0 0.0
        %255 = vmatprep.subr.mxu0 0.0
        %256 = vmatpush1.msra.mxu0 0.0
        %257 = vmatprep.subr.mxu0 0.0
        %258 = vmatpush1.msra.mxu0 0.0
        %259 = vmatprep.subr.mxu0 0.0
        %260 = vmatpush1.msra.mxu0 0.0
        %261 = vmatprep.subr.mxu0 0.0
        %262 = vmatpush1.msra.mxu0 0.0
        %263 = vmatprep.subr.mxu0 0.0
        %264 = vmatpush1.msra.mxu0 0.0
        %265 = vmatprep.subr.mxu0 0.0
        %266 = vmatpush1.msra.mxu0 0.0
        %267 = vmatprep.subr.mxu0 0.0
        %268 = vmatpush1.msra.mxu0 0.0
        %269 = vmatprep.subr.mxu0 0.0
        %270 = vmatpush1.msra.mxu0 0.0
        %271 = vmatprep.subr.mxu0 0.0
        %272 = vmatpush1.msra.mxu0 0.0
        %273 = vmatprep.subr.mxu0 0.0
        %274 = vmatpush1.msra.mxu0 0.0
        %275 = vmatprep.subr.mxu0 0.0
        %276 = vmatpush1.msra.mxu0 0.0
        %277 = vmatprep.subr.mxu0 0.0
        %278 = vmatpush1.msra.mxu0 0.0
        %279 = vmatprep.subr.mxu0 0.0
        %280 = vmatpush1.msra.mxu0 0.0
        %281 = vmatprep.subr.mxu0 0.0
        %282 = vmatpush1.msra.mxu0 0.0
        %283 = vmatprep.mubr.f32.mxu0 0.0
        %284 = vmatmul.mubr.f32.gmra.mrb[0].mxu0 %v213
        %v285 = vpop.f32.mrb[0].mxu0
        %v286 = vadd.f32 %v209, %v285
        %v287 = vpop.f32.mrb[0].mxu0
        %288 = vdwg.mxu0
        %vm289 = vcmask 519168
        %290 = vst.msk [vmem:[%s202] sm:$0xf] %vm289, %v286
        %s291 = sand.u32 %s112, 1
        %s292 = scalar_lea.sflag [#allocation4], %s291
        %s293 = sand.u32 %s112, 1
        %s294 = smul.addr %s293, 4
        %s295 = scalar_lea.vmem [#allocation5], %s294
        // Predicated region
        $region37: #{tpu_custom_call.1} parent=31 // pred_check
          %p296 = pneg %p122
        $region38: #{tpu_custom_call.1} parent=31 // pred_check_branch
          %298 = sbr.rel (%p296) target = $region40
        $region39: #{tpu_custom_call.1} parent=31 // pred_region
          %s300 = ssub.s32 64, 64
          %301 = vsyncadd %s292, %s300
          %s302 = sadd.s32 %s25, %s24
          %s303 = smul.addr %s302, 64
          %s304 = scalar_lea.hbm %s3, %s303
          %s306 = sshll.u32 %s295, 4
          %s307 = int_to_ptr.vmem [resolvable:$true] %s306
          %309 = dma.vmem_to_hbm [thread:$0]  %s307, 64, %s304, %s292
        $region40: #{tpu_custom_call.1} parent=31 // pred_fallthru
          _
      $region32: #{tpu_custom_call.1} parent=5 // pred_fallthru
        _
      %p310 = scmp.le.s32.totalorder 2, %s15
      // Predicated region
      $region41: #{tpu_custom_call.1} parent=5 // pred_check
        %p311 = pneg %p310
      $region42: #{tpu_custom_call.1} parent=5 // pred_check_branch
        %313 = sbr.rel (%p311) target = $region44
      $region43: #{tpu_custom_call.1} parent=5 // pred_region
        %s314 = ssub.s32 %s15, 2
        // Predicated region
        $region45: #{tpu_custom_call.1} parent=43 // pred_check
          %p315 = pneg %p128
        $region46: #{tpu_custom_call.1} parent=43 // pred_check_branch
          %317 = sbr.rel (%p315) target = $region48
        $region47: #{tpu_custom_call.1} parent=43 // pred_region
          %s318 = sand.u32 %s113, 1
          %s319 = scalar_lea.sflag [#allocation4], %s318
          %s320 = sand.u32 %s113, 1
          %s321 = smul.addr %s320, 4
          %s322 = scalar_lea.vmem [#allocation5], %s321
          %323 = dma.done %s319, 64
        $region48: #{tpu_custom_call.1} parent=43 // pred_fallthru
          _
      $region44: #{tpu_custom_call.1} parent=5 // pred_fallthru
        _
    $region6: #{tpu_custom_call.1} parent=1 // loop_footer
      %s19 = sadd.s32 1, %s15
    $region7: #{tpu_custom_call.1} parent=1 // loop_footer_branch
      %14 = sbr.rel target = $region3
    $region8: #{tpu_custom_call.1} parent=1 // loop_exit
      _
    %324 = vsyncpa [#allocation3], 1
    %s325 = scalar_lea.sflag [#allocation3], 1
    %326 = vsyncpa %s325, 1
    %327 = vsyncpa [#allocation4], 1
    %s328 = scalar_lea.sflag [#allocation4], 1
    %329 = vsyncpa %s328, 1

</llo_original>
